<compile_context>
chip_gen: v6e
topology: v6e:2x2x1
jax: 0.10.0
libtpu: 0.0.40
codegen_flags: <defaults>
</compile_context>

<pallas_src>
import functools

import jax
import jax.numpy as jnp
from jax import lax
from jax.experimental import pallas as pl
from jax.experimental.pallas import tpu as pltpu


def _round_up(x, m):
    return (x + m - 1) // m * m


def _cdiv(a, b):
    return (a + b - 1) // b


def _topk_softmax_store(k, noisy, out_ref):
    """noisy: (n, e) f32 logits.  Writes packed [gw | vals | idx-as-float]."""
    n, e = noisy.shape
    neg_inf = jnp.float32(-jnp.inf)
    col_ids = lax.broadcasted_iota(jnp.int32, (n, e), 1)
    kcol = lax.broadcasted_iota(jnp.int32, (n, k), 1)

    def body(j, carry):
        work, sparse, vals, idxs = carry
        m = jnp.max(work, axis=-1, keepdims=True)                     # (n,1)
        idx = jnp.min(jnp.where(work == m, col_ids, e),
                      axis=-1, keepdims=True)                         # (n,1)
        vals = jnp.where(kcol == j, m, vals)
        idxs = jnp.where(kcol == j, idx, idxs)
        sel = col_ids == idx
        sparse = jnp.where(sel, noisy, sparse)
        work = jnp.where(sel, neg_inf, work)
        return work, sparse, vals, idxs

    init = (noisy,
            jnp.full((n, e), neg_inf, jnp.float32),
            jnp.zeros((n, k), jnp.float32),
            jnp.zeros((n, k), jnp.int32))
    # Iterative top-k (k tiny & static).  fori_loop bounds the live set; the
    # unroll keeps scheduling quality.  Values come out sorted descending;
    # ties resolve to the smallest expert index.
    _, sparse, vals, idxs = lax.fori_loop(0, k, body, init, unroll=True)

    # Softmax over the sparse (-inf elsewhere) logits; row max == top-1 value.
    mx = vals[:, 0:1]
    ex = jnp.exp(sparse - mx)                 # exp(-inf) -> 0 on masked lanes
    denom = jnp.sum(ex, axis=-1, keepdims=True)
    gw = ex / denom                           # exact divide: kernel is DMA-bound

    # Coalesced stores into the single packed output slab (one DMA per tile).
    out_ref[:, 0:e] = gw
    out_ref[:, e:e + k] = vals
    out_ref[:, e + k:e + 2 * k] = idxs.astype(jnp.float32)   # exact for E < 2^24


def _gate_kernel(k, compute_dtype, x_ref, wt_ref, out_ref):
    x = x_ref[...].astype(compute_dtype)      # cast in-kernel; no wrapper pass
    logits = jnp.dot(x, wt_ref[...], preferred_element_type=jnp.float32)
    _topk_softmax_store(k, logits, out_ref)


def _gate_kernel_noisy(k, compute_dtype, x_ref, wt_ref, noise_ref, nw_ref,
                       out_ref):
    x = x_ref[...].astype(compute_dtype)
    logits = jnp.dot(x, wt_ref[...], preferred_element_type=jnp.float32)
    noisy = logits + noise_ref[...].astype(jnp.float32) * nw_ref[...]
    _topk_softmax_store(k, noisy, out_ref)


def topk_moe_gate(x, gate_w, k, *, noise=None, noise_weight=None,
                  compute_dtype=jnp.bfloat16):
    """x: (B,T,D); gate_w: (E,D); optional noise: (B,T,E), noise_weight: (E,).

    Returns (gated_weights (B,T,E) f32, top_k_indices (B,T,k) int32,
             top_k_logits_noisy (B,T,k) f32) -- same semantics as the torch
    module.  Pass noise=None / noise_weight=None to skip the noise path
    entirely (exactly equivalent when noise_weight is all zeros, as at init).
    """
    B, T, D = x.shape
    E = gate_w.shape[0]
    N = B * T
    W = E + 2 * k                                   # packed output lane width

    use_noise = (noise is not None) and (noise_weight is not None)

    x_bytes = jnp.dtype(x.dtype).itemsize
    n_bytes = jnp.dtype(noise.dtype).itemsize if use_noise else 0
    w_bytes = jnp.dtype(compute_dtype).itemsize

    # --- tile sizing against a per-generation VMEM budget -------------------
    # Per-token-row VMEM cost: double-buffered x tile + double-buffered packed
    # f32 output tile (+ double-buffered noise tile) + headroom for in-kernel
    # f32 temporaries of the top-k / softmax.
    per_row = 2 * D * x_bytes + 2 * W * 4 + 8 * E * 4
    if use_noise:
        per_row += 2 * E * n_bytes
    try:
        vmem_cap = pltpu.get_tpu_info().vmem_capacity_bytes
    except Exception:
        vmem_cap = 64 << 20                          # conservative (v7x per-TC)
    budget = max(min(vmem_cap // 3, 28 << 20), 8 << 20)
    tm = max(128, (budget // per_row) // 128 * 128)
    # Keep >= ~4 grid steps when there is enough work so v7x can shard the
    # grid across both TensorCores and the BlockSpec pipeline can overlap.
    if N >= 4 * 256:
        tm = min(tm, max(256, _round_up(_cdiv(N, 4), 128)))
    TM = min(tm, _round_up(N, 16))                   # 16: bf16 sublane packing
    grid = (_cdiv(N, TM),)

    est_vmem = TM * per_row + 2 * D * E * w_bytes + (4 << 20)
    vmem_limit = int(min(max(est_vmem, 32 << 20), 56 << 20))

    x2 = x.reshape(N, D)                             # native dtype, no cast pass
    wt = gate_w.T.astype(compute_dtype)              # (D, E): tiny, host cast ok

    in_specs = [
        pl.BlockSpec((TM, D), lambda i: (i, 0)),
        pl.BlockSpec((D, E), lambda i: (0, 0)),
    ]
    args = [x2, wt]
    if use_noise:
        nz2 = noise.reshape(N, E)                    # native dtype, cast in-kernel
        nw = noise_weight.reshape(1, E).astype(jnp.float32)
        in_specs += [
            pl.BlockSpec((TM, E), lambda i: (i, 0)),
            pl.BlockSpec((1, E), lambda i: (0, 0)),
        ]
        args += [nz2, nw]
        kernel = functools.partial(_gate_kernel_noisy, k, compute_dtype)
    else:
        kernel = functools.partial(_gate_kernel, k, compute_dtype)

    out = pl.pallas_call(
        kernel,
        out_shape=jax.ShapeDtypeStruct((N, W), jnp.float32),
        grid=grid,
        in_specs=in_specs,
        out_specs=pl.BlockSpec((TM, W), lambda i: (i, 0)),
        compiler_params=pltpu.CompilerParams(
            dimension_semantics=("parallel",),
            vmem_limit_bytes=vmem_limit),
    )(*args)

    gw = out[:, :E].reshape(B, T, E)
    vals = out[:, E:E + k].reshape(B, T, k)
    idx = out[:, E + k:E + 2 * k].astype(jnp.int32).reshape(B, T, k)
    return gw, idx, vals


def _reference(x, gate_w, k, noise=None, noise_weight=None,
               compute_dtype=jnp.bfloat16):
    # Mirrors the torch forward; inputs are cast through compute_dtype so the
    # reference shares the kernel's in-kernel bf16 quantization of the matmul.
    xc = x.astype(compute_dtype).astype(jnp.float32)
    wc = gate_w.astype(compute_dtype).astype(jnp.float32)
    logits = jnp.einsum("btd,ed->bte", xc, wc)
    if noise is not None and noise_weight is not None:
        logits = logits + noise * noise_weight
    vals, idx = jax.lax.top_k(logits, k)
    one_hot = jax.nn.one_hot(idx, logits.shape[-1], dtype=bool).any(axis=-2)
    masked = jnp.where(one_hot, logits, -jnp.inf)
    gw = jax.nn.softmax(masked, axis=-1)
    return gw, idx, vals


if __name__ == "__main__":
    # config: n_embd=8, num_experts=5, k=2, seq_len=7
    B, T, D, E, K = 2, 7, 8, 5, 2
    key = jax.random.PRNGKey(0)
    kx, kw, kn, knw = jax.random.split(key, 4)

    x = jax.random.normal(kx, (B, T, D), jnp.float32)
    # nn.Linear default init ~ U(-1/sqrt(D), 1/sqrt(D)); deterministic here.
    gate_w = jax.random.uniform(kw, (E, D), jnp.float32,
                                minval=-1.0 / jnp.sqrt(D),
                                maxval=1.0 / jnp.sqrt(D))
    noisy_std = 1.0
    # TODO(synk): torch.randn_like RNG is not reproducible in JAX; noise is
    # sampled host-side with jax.random instead of in the kernel.
    noise = jax.random.normal(kn, (B, T, E), jnp.float32) * noisy_std

    # --- path 1: module as initialized (noise_weight == zeros) --------------
    # noise * 0 == 0, so the (N, E) noise read is skipped entirely.
    gw, idx, vals = topk_moe_gate(x, gate_w, K)
    jax.block_until_ready((gw, idx, vals))
    gw_r, idx_r, vals_r = _reference(x, gate_w, K)
    assert jnp.array_equal(idx, idx_r.astype(jnp.int32)), "idx mismatch (no-noise)"
    assert jnp.allclose(vals, vals_r, atol=1e-4), "top-k values mismatch (no-noise)"
    assert jnp.allclose(gw, gw_r, atol=5e-3), "gated weights mismatch (no-noise)"
    assert jnp.allclose(gw.sum(-1), 1.0, atol=1e-5)

    # --- path 2: general path with a (trained) nonzero noise_weight ---------
    noise_weight = 0.1 * jax.random.normal(knw, (E,), jnp.float32)
    gw2, idx2, vals2 = topk_moe_gate(x, gate_w, K, noise=noise,
                                     noise_weight=noise_weight)
    jax.block_until_ready((gw2, idx2, vals2))
    gw2_r, idx2_r, vals2_r = _reference(x, gate_w, K, noise=noise,
                                        noise_weight=noise_weight)
    assert jnp.array_equal(idx2, idx2_r.astype(jnp.int32)), "idx mismatch (noisy)"
    assert jnp.allclose(vals2, vals2_r, atol=1e-4), "top-k values mismatch (noisy)"
    assert jnp.allclose(gw2, gw2_r, atol=5e-3), "gated weights mismatch (noisy)"
    assert jnp.allclose(gw2.sum(-1), 1.0, atol=1e-5)

    print("KERNEL_OK")
</pallas_src>

<mosaic_0001>
module attributes {stable_mosaic.version = 11 : i64} {
  func.func @_gate_kernel(%arg0: i32, %arg1: memref<16x8xf32, #tpu.memory_space<vmem>>, %arg2: memref<8x5xbf16, #tpu.memory_space<vmem>>, %arg3: memref<16x9xf32, #tpu.memory_space<vmem>>) attributes {dimension_semantics = [#tpu.dimension_semantics<parallel>], iteration_bounds = array<i64: 1>, scalar_prefetch = 0 : i64, scratch_operands = 0 : i64, tpu.core_type = #tpu.core_type<tc>, window_params = [{transform_indices = @transform_0, window_bounds = array<i64: 16, 8>}, {pipeline_mode = #tpu.pipeline_mode<synchronous>, transform_indices = @transform_1, window_bounds = array<i64: 8, 5>}, {transform_indices = @transform_2, window_bounds = array<i64: 16, 9>}]} {
    %c0 = arith.constant 0 : index
    %c0_0 = arith.constant 0 : index
    %0 = vector.load %arg1[%c0, %c0_0] : memref<16x8xf32, #tpu.memory_space<vmem>>, vector<16x8xf32>
    %1 = arith.truncf %0 : vector<16x8xf32> to vector<16x8xbf16>
    %c0_1 = arith.constant 0 : index
    %c0_2 = arith.constant 0 : index
    %2 = vector.load %arg2[%c0_1, %c0_2] : memref<8x5xbf16, #tpu.memory_space<vmem>>, vector<8x5xbf16>
    %cst = arith.constant dense<0.000000e+00> : vector<16x5xf32>
    %3 = tpu.matmul %1, %2, %cst {dimension_numbers = #tpu.dot_dimension_numbers<[1], [0], [0], [1], [0, 0, 1, 1], [], []>} : vector<16x8xbf16>, vector<8x5xbf16>, vector<16x5xf32> -> vector<16x5xf32>
    %4 = tpu.iota {dimensions = array<i32: 1>} : vector<16x5xi32>
    %5 = tpu.iota {dimensions = array<i32: 1>} : vector<16x2xi32>
    %cst_3 = arith.constant 0xFF800000 : f32
    %6 = vector.broadcast %cst_3 : f32 to vector<16x5xf32>
    %cst_4 = arith.constant 0.000000e+00 : f32
    %7 = vector.broadcast %cst_4 : f32 to vector<16x2xf32>
    %c0_i32 = arith.constant 0 : i32
    %8 = vector.broadcast %c0_i32 : i32 to vector<16x2xi32>
    %cst_5 = arith.constant 0xFF800000 : f32
    %c0_i32_6 = arith.constant 0 : i32
    %cst_7 = arith.constant dense<0xFF800000> : vector<16xf32>
    %9 = vector.multi_reduction <maximumf>, %3, %cst_7 [1] : vector<16x5xf32> to vector<16xf32>
    %10 = vector.shape_cast %9 : vector<16xf32> to vector<16x1xf32>
    %11 = vector.broadcast %10 : vector<16x1xf32> to vector<16x5xf32>
    %12 = arith.cmpf oeq, %3, %11 : vector<16x5xf32>
    %c5_i32 = arith.constant 5 : i32
    %13 = vector.broadcast %c5_i32 : i32 to vector<16x5xi32>
    %14 = arith.select %12, %4, %13 : vector<16x5xi1>, vector<16x5xi32>
    %cst_8 = arith.constant dense<2147483647> : vector<16xi32>
    %15 = vector.multi_reduction <minsi>, %14, %cst_8 [1] : vector<16x5xi32> to vector<16xi32>
    %16 = vector.shape_cast %15 : vector<16xi32> to vector<16x1xi32>
    %17 = vector.broadcast %c0_i32_6 : i32 to vector<16x2xi32>
    %18 = arith.cmpi eq, %5, %17 : vector<16x2xi32>
    %19 = vector.shape_cast %10 : vector<16x1xf32> to vector<16x1xf32>
    %20 = vector.broadcast %19 : vector<16x1xf32> to vector<16x2xf32>
    %21 = arith.select %18, %20, %7 : vector<16x2xi1>, vector<16x2xf32>
    %22 = vector.broadcast %c0_i32_6 : i32 to vector<16x2xi32>
    %23 = arith.cmpi eq, %5, %22 : vector<16x2xi32>
    %24 = vector.shape_cast %16 : vector<16x1xi32> to vector<16x1xi32>
    %25 = vector.broadcast %24 : vector<16x1xi32> to vector<16x2xi32>
    %26 = arith.select %23, %25, %8 : vector<16x2xi1>, vector<16x2xi32>
    %27 = vector.broadcast %16 : vector<16x1xi32> to vector<16x5xi32>
    %28 = arith.cmpi eq, %4, %27 : vector<16x5xi32>
    %29 = arith.select %28, %3, %6 : vector<16x5xi1>, vector<16x5xf32>
    %30 = vector.broadcast %cst_5 : f32 to vector<16x5xf32>
    %31 = arith.select %28, %30, %3 : vector<16x5xi1>, vector<16x5xf32>
    %c1_i32 = arith.constant 1 : i32
    %cst_9 = arith.constant dense<0xFF800000> : vector<16xf32>
    %32 = vector.multi_reduction <maximumf>, %31, %cst_9 [1] : vector<16x5xf32> to vector<16xf32>
    %33 = vector.shape_cast %32 : vector<16xf32> to vector<16x1xf32>
    %34 = vector.broadcast %33 : vector<16x1xf32> to vector<16x5xf32>
    %35 = arith.cmpf oeq, %31, %34 : vector<16x5xf32>
    %c5_i32_10 = arith.constant 5 : i32
    %36 = vector.broadcast %c5_i32_10 : i32 to vector<16x5xi32>
    %37 = arith.select %35, %4, %36 : vector<16x5xi1>, vector<16x5xi32>
    %cst_11 = arith.constant dense<2147483647> : vector<16xi32>
    %38 = vector.multi_reduction <minsi>, %37, %cst_11 [1] : vector<16x5xi32> to vector<16xi32>
    %39 = vector.shape_cast %38 : vector<16xi32> to vector<16x1xi32>
    %40 = vector.broadcast %c1_i32 : i32 to vector<16x2xi32>
    %41 = arith.cmpi eq, %5, %40 : vector<16x2xi32>
    %42 = vector.shape_cast %33 : vector<16x1xf32> to vector<16x1xf32>
    %43 = vector.broadcast %42 : vector<16x1xf32> to vector<16x2xf32>
    %44 = arith.select %41, %43, %21 : vector<16x2xi1>, vector<16x2xf32>
    %45 = vector.broadcast %c1_i32 : i32 to vector<16x2xi32>
    %46 = arith.cmpi eq, %5, %45 : vector<16x2xi32>
    %47 = vector.shape_cast %39 : vector<16x1xi32> to vector<16x1xi32>
    %48 = vector.broadcast %47 : vector<16x1xi32> to vector<16x2xi32>
    %49 = arith.select %46, %48, %26 : vector<16x2xi1>, vector<16x2xi32>
    %50 = vector.broadcast %39 : vector<16x1xi32> to vector<16x5xi32>
    %51 = arith.cmpi eq, %4, %50 : vector<16x5xi32>
    %52 = arith.select %51, %3, %29 : vector<16x5xi1>, vector<16x5xf32>
    %53 = vector.broadcast %cst_5 : f32 to vector<16x5xf32>
    %54 = arith.select %51, %53, %31 : vector<16x5xi1>, vector<16x5xf32>
    %c2_i32 = arith.constant 2 : i32
    %55 = vector.extract_strided_slice %44 {offsets = [0, 0], sizes = [16, 1], strides = [1, 1]} : vector<16x2xf32> to vector<16x1xf32>
    %56 = vector.broadcast %55 : vector<16x1xf32> to vector<16x5xf32>
    %57 = arith.subf %52, %56 : vector<16x5xf32>
    %58 = math.exp %57 : vector<16x5xf32>
    %cst_12 = arith.constant dense<0.000000e+00> : vector<16xf32>
    %59 = vector.multi_reduction <add>, %58, %cst_12 [1] : vector<16x5xf32> to vector<16xf32>
    %60 = vector.shape_cast %59 : vector<16xf32> to vector<16x1xf32>
    %61 = vector.broadcast %60 : vector<16x1xf32> to vector<16x5xf32>
    %62 = arith.divf %58, %61 : vector<16x5xf32>
    %c0_13 = arith.constant 0 : index
    %c0_14 = arith.constant 0 : index
    %63 = vector.load %arg3[%c0_13, %c0_14] : memref<16x9xf32, #tpu.memory_space<vmem>>, vector<16x5xf32>
    tpu.vector_store %arg3[%c0_13, %c0_14], %62 {strides = array<i32>} : memref<16x9xf32, #tpu.memory_space<vmem>>, vector<16x5xf32>,
    %c0_15 = arith.constant 0 : index
    %c5 = arith.constant 5 : index
    %64 = vector.load %arg3[%c0_15, %c5] : memref<16x9xf32, #tpu.memory_space<vmem>>, vector<16x2xf32>
    tpu.vector_store %arg3[%c0_15, %c5], %44 {strides = array<i32>} : memref<16x9xf32, #tpu.memory_space<vmem>>, vector<16x2xf32>,
    %65 = arith.sitofp %49 : vector<16x2xi32> to vector<16x2xf32>
    %c0_16 = arith.constant 0 : index
    %c7 = arith.constant 7 : index
    %66 = vector.load %arg3[%c0_16, %c7] : memref<16x9xf32, #tpu.memory_space<vmem>>, vector<16x2xf32>
    tpu.vector_store %arg3[%c0_16, %c7], %65 {strides = array<i32>} : memref<16x9xf32, #tpu.memory_space<vmem>>, vector<16x2xf32>,
    return
  }
  func.func @transform_0(%arg0: i32) -> (i32, i32) {
    %c0_i32 = arith.constant 0 : i32
    %c0_i32_0 = arith.constant 0 : i32
    return %arg0, %c0_i32 : i32, i32
  }
  func.func @transform_1(%arg0: i32) -> (i32, i32) {
    %c0_i32 = arith.constant 0 : i32
    %c0_i32_0 = arith.constant 0 : i32
    %c0_i32_1 = arith.constant 0 : i32
    return %c0_i32, %c0_i32_0 : i32, i32
  }
  func.func @transform_2(%arg0: i32) -> (i32, i32) {
    %c0_i32 = arith.constant 0 : i32
    %c0_i32_0 = arith.constant 0 : i32
    return %arg0, %c0_i32 : i32, i32
  }
}

</mosaic_0001>

<llo_original>
// kernel: tpu_custom_call.1
$region0: #{tpu_custom_call.1}
  #allocation0 [shape = 'u32[]', space=smem, size = 0x4, offset = 0x4, fixed_abs, tag = 'smem constant byte address 0x4 - core index']
  #allocation1 [shape = 'u32[144,128]{1,0:T(1,128)}', space=vmem, size = 0x12000, scoped, tag = 'internal scratch']
  %s0 = inlined_call_operand.vmem [shape: f32[14,8], index: 0, kind: input, shape index: {}]
  %s1 = inlined_call_operand.vmem [shape: bf16[8,5], index: 1, kind: input, shape index: {}]
  %s2 = inlined_call_operand.hbm [shape: f32[14,9], index: 2, kind: output, shape index: {}]
  %s3 = sld [smem:[#allocation0]]
  $region18: #{tpu_custom_call.1} parent=0
    _
  %s5 = ssub.s32 1, %s3
  %s6 = scalar_select 0, %s5, %s3
  $region1: #{tpu_custom_call.1} parent=0
    #allocation2 [shape = 'u8[8192]{0}', space=vmem, size = 0x2000, scoped, tag = 'output window, operand 0, single buffered']
    #allocation3 [shape = 's32[1]{0}', space=sflag, size = 0x4, scoped, tag = 'scoped memory for tpu_custom_call.1']
    %7 = vsyncpa [#allocation3], 0
    // Predicated region
    $region2: #{tpu_custom_call.1} parent=1 // pred_check
      _
    $region3: #{tpu_custom_call.1} parent=1 // pred_check_branch
      %9 = sbr.rel (0) target = $region5
    $region4: #{tpu_custom_call.1} parent=1 // pred_region
      _
    $region5: #{tpu_custom_call.1} parent=1 // pred_fallthru
      _
    // Predicated region
    $region6: #{tpu_custom_call.1} parent=1 // pred_check
      _
    $region7: #{tpu_custom_call.1} parent=1 // pred_check_branch
      %11 = sbr.rel (0) target = $region9
    $region8: #{tpu_custom_call.1} parent=1 // pred_region
      _
    $region9: #{tpu_custom_call.1} parent=1 // pred_fallthru
      _
    %v13 = vld [vmem:[%s0] sm:$0xff]
    %v14 = vld [vmem:[%s0 + $0x8] sm:$0xff]
    %v15 = vpack.c.bf16 %v14, %v13
    %v16 = vld [vmem:[%s1] sm:$0xf]
    %vm17 = vcmask 64512
    %v19 = vsel %vm17, %v15, 0
    %vm21 = vcmask 1043456
    %v23 = vsel %vm21, %v16, 0
    %25 = vmatprep.subr.bf16.mxu0 0
    %26 = vmatpush1.bf16.msra.mxu0 0
    %27 = vmatprep.subr.bf16.mxu0 0
    %28 = vmatpush1.bf16.msra.mxu0 0
    %29 = vmatprep.subr.bf16.mxu0 0
    %30 = vmatpush1.bf16.msra.mxu0 0
    %31 = vmatprep.subr.bf16.mxu0 0
    %32 = vmatpush1.bf16.msra.mxu0 0
    %33 = vmatprep.subr.bf16.mxu0 0
    %34 = vmatpush1.bf16.msra.mxu0 0
    %35 = vmatprep.subr.bf16.mxu0 0
    %36 = vmatpush1.bf16.msra.mxu0 0
    %37 = vmatprep.subr.bf16.mxu0 0
    %38 = vmatpush1.bf16.msra.mxu0 0
    %39 = vmatprep.subr.bf16.mxu0 0
    %40 = vmatpush1.bf16.msra.mxu0 %v23
    %41 = vmatprep.subr.bf16.mxu0 0
    %42 = vmatpush2.bf16.msra.mxu0 0
    %43 = vmatprep.subr.bf16.mxu0 0
    %44 = vmatpush2.bf16.msra.mxu0 0
    %45 = vmatprep.subr.bf16.mxu0 0
    %46 = vmatpush2.bf16.msra.mxu0 0
    %47 = vmatprep.subr.bf16.mxu0 0
    %48 = vmatpush2.bf16.msra.mxu0 0
    %49 = vmatprep.subr.bf16.mxu0 0
    %50 = vmatpush2.bf16.msra.mxu0 0
    %51 = vmatprep.subr.bf16.mxu0 0
    %52 = vmatpush2.bf16.msra.mxu0 0
    %53 = vmatprep.subr.bf16.mxu0 0
    %54 = vmatpush2.bf16.msra.mxu0 0
    %55 = vmatprep.subr.bf16.mxu0 0
    %56 = vmatpush2.bf16.msra.mxu0 0
    %57 = vmatprep.mubr.bf16.mxu0 0
    %58 = vmatmul.mubr.bf16.gmra.mxu0 %v19
    %v59 = vpop.f32.mrf.mxu0
    %v60 = vadd.f32 0.0, %v59
    %v61 = vpop.f32.mrf.mxu0
    %v62 = vpop.f32.mrf.mxu0
    %v63 = vadd.f32 0.0, %v62
    %v64 = vpop.f32.mrf.mxu0
    %65 = vdwg.mxu0
    %v66 = vlaneseq
    %v67 = vand.u32 %v66, 127
    %vm68 = vcmask 39936
    %v69 = vsel %vm68, %v60, -inf
    %70 = vmax.xlane.f32.xlu0 %v69
    %v71 = vpop.xlane.xlu0 %70
    %v72 = vsel %vm68, %v63, -inf
    %73 = vmax.xlane.f32.xlu0 %v72
    %v74 = vpop.xlane.xlu0 %73
    %vm75 = vcmp.eq.f32.partialorder %v60, %v71
    %vm76 = vcmp.eq.f32.partialorder %v63, %v74
    %v77 = vsel %vm75, %v67, 5
    %v78 = vsel %vm76, %v67, 5
    %v79 = vsel %vm68, %v77, 2147483647
    %v80 = vand.u32 %v79, 65535
    %v81 = vshra.s32 %v79, 16
    %v82 = vcvt.s32.f32 %v80
    %v83 = vcvt.s32.f32 %v81
    %84 = vmin.xlane.f32.xlu0 %v83
    %v85 = vpop.xlane.xlu0 %84
    %vm86 = vcmp.eq.f32.partialorder %v83, %v85
    %v87 = vsel %vm86, %v82, inf
    %88 = vmin.xlane.f32.xlu0 %v87
    %v89 = vpop.xlane.xlu0 %88
    %v90 = vcvt.f32.s32 %v89
    %v91 = vcvt.f32.s32 %v85
    %v92 = vshll.u32 %v91, 16
    %v93 = vadd.s32 %v92, %v90
    %v94 = vsel %vm68, %v78, 2147483647
    %v95 = vand.u32 %v94, 65535
    %v96 = vshra.s32 %v94, 16
    %v97 = vcvt.s32.f32 %v95
    %v98 = vcvt.s32.f32 %v96
    %99 = vmin.xlane.f32.xlu0 %v98
    %v100 = vpop.xlane.xlu0 %99
    %vm101 = vcmp.eq.f32.partialorder %v98, %v100
    %v102 = vsel %vm101, %v97, inf
    %103 = vmin.xlane.f32.xlu0 %v102
    %v104 = vpop.xlane.xlu0 %103
    %v105 = vcvt.f32.s32 %v104
    %v106 = vcvt.f32.s32 %v100
    %v107 = vshll.u32 %v106, 16
    %v108 = vadd.s32 %v107, %v105
    %vm109 = vcmp.eq.s32.totalorder %v67, 0
    %v110 = vsel %vm109, %v71, 0.0
    %v111 = vsel %vm109, %v74, 0.0
    %v112 = vsel %vm109, %v93, 0
    %v113 = vsel %vm109, %v108, 0
    %vm114 = vcmp.eq.s32.totalorder %v67, %v93
    %vm115 = vcmp.eq.s32.totalorder %v67, %v108
    %v116 = vsel %vm114, %v60, -inf
    %v117 = vsel %vm115, %v63, -inf
    %v118 = vsel %vm114, -inf, %v60
    %v119 = vsel %vm115, -inf, %v63
    %v120 = vsel %vm68, %v118, -inf
    %121 = vmax.xlane.f32.xlu0 %v120
    %v122 = vpop.xlane.xlu0 %121
    %v123 = vsel %vm68, %v119, -inf
    %124 = vmax.xlane.f32.xlu0 %v123
    %v125 = vpop.xlane.xlu0 %124
    %vm126 = vcmp.eq.f32.partialorder %v118, %v122
    %vm127 = vcmp.eq.f32.partialorder %v119, %v125
    %v128 = vsel %vm126, %v67, 5
    %v129 = vsel %vm127, %v67, 5
    %v130 = vsel %vm68, %v128, 2147483647
    %v131 = vand.u32 %v130, 65535
    %v132 = vshra.s32 %v130, 16
    %v133 = vcvt.s32.f32 %v131
    %v134 = vcvt.s32.f32 %v132
    %135 = vmin.xlane.f32.xlu0 %v134
    %v136 = vpop.xlane.xlu0 %135
    %vm137 = vcmp.eq.f32.partialorder %v134, %v136
    %v138 = vsel %vm137, %v133, inf
    %139 = vmin.xlane.f32.xlu0 %v138
    %v140 = vpop.xlane.xlu0 %139
    %v141 = vcvt.f32.s32 %v140
    %v142 = vcvt.f32.s32 %v136
    %v143 = vshll.u32 %v142, 16
    %v144 = vadd.s32 %v143, %v141
    %v145 = vsel %vm68, %v129, 2147483647
    %v146 = vand.u32 %v145, 65535
    %v147 = vshra.s32 %v145, 16
    %v148 = vcvt.s32.f32 %v146
    %v149 = vcvt.s32.f32 %v147
    %150 = vmin.xlane.f32.xlu0 %v149
    %v151 = vpop.xlane.xlu0 %150
    %vm152 = vcmp.eq.f32.partialorder %v149, %v151
    %v153 = vsel %vm152, %v148, inf
    %154 = vmin.xlane.f32.xlu0 %v153
    %v155 = vpop.xlane.xlu0 %154
    %v156 = vcvt.f32.s32 %v155
    %v157 = vcvt.f32.s32 %v151
    %v158 = vshll.u32 %v157, 16
    %v159 = vadd.s32 %v158, %v156
    %vm160 = vcmp.eq.s32.totalorder %v67, 1
    %v161 = vsel %vm160, %v122, %v110
    %v162 = vsel %vm160, %v125, %v111
    %v163 = vsel %vm160, %v144, %v112
    %v164 = vsel %vm160, %v159, %v113
    %vm165 = vcmp.eq.s32.totalorder %v67, %v144
    %vm166 = vcmp.eq.s32.totalorder %v67, %v159
    %v167 = vsel %vm165, %v60, %v116
    %v168 = vsel %vm166, %v63, %v117
    %170 = vset.pattern.permute.xlu0 0
    %171 = vperm.xlu0 %170, %v161
    %v172 = vpop.permute.xlu0 %171
    %175 = vset.pattern.permute.xlu0 0
    %176 = vperm.xlu0 %175, %v162
    %v177 = vpop.permute.xlu0 %176
    %v179 = vsub.f32 %v167, %v172
    %v180 = vsub.f32 %v168, %v177
    %v181 = vmul.f32 %v179, 1.442695
    %v182 = vpow.pop %v181
    %v183 = vmul.f32 %v180, 1.442695
    %v184 = vpow.pop %v183
    %v185 = vsel %vm68, %v182, 0.0
    %186 = vadd.xlane.f32.xlu0 %v185
    %v187 = vpop.xlane.xlu0 %186
    %v188 = vsel %vm68, %v184, 0.0
    %189 = vadd.xlane.f32.xlu0 %v188
    %v190 = vpop.xlane.xlu0 %189
    %v191 = vrcp.pop %v187
    %v192 = vmul.f32 %v182, %v191
    %v193 = vrcp.pop %v190
    %v194 = vmul.f32 %v184, %v193
    %195 = vst.msk [vmem:[#allocation2] sm:$0xff] %vm68, %v192
    %196 = vst.msk [vmem:[#allocation2 + $0x8] sm:$0xff] %vm68, %v194
    %197 = vrot.lane.b32.xlu0 %v161, 5
    %v198 = vpop.permute.xlu0 %197
    %199 = vrot.lane.b32.xlu0 %v162, 5
    %v200 = vpop.permute.xlu0 %199
    %vm203 = vcmask 56360
    %204 = vst.msk [vmem:[#allocation2] sm:$0xff] %vm203, %v198
    %205 = vst.msk [vmem:[#allocation2 + $0x8] sm:$0xff] %vm203, %v200
    %v206 = vcvt.s32.f32 %v163
    %v207 = vcvt.s32.f32 %v164
    %210 = vrot.lane.b32.xlu0 %v206, 7
    %v211 = vpop.permute.xlu0 %210
    %212 = vrot.lane.b32.xlu0 %v207, 7
    %v213 = vpop.permute.xlu0 %212
    %vm216 = vcmask 72760
    %217 = vst.msk [vmem:[#allocation2] sm:$0xff] %vm216, %v211
    %218 = vst.msk [vmem:[#allocation2 + $0x8] sm:$0xff] %vm216, %v213
    // Predicated region
    $region10: #{tpu_custom_call.1} parent=1 // pred_check
      _
    $region11: #{tpu_custom_call.1} parent=1 // pred_check_branch
      %220 = sbr.rel (0) target = $region13
    $region12: #{tpu_custom_call.1} parent=1 // pred_region
      %s222 = ssub.s32 256, 256
      %223 = vsyncadd [#allocation3], %s222
      %s224 = sshll.u32 [#allocation2], 4
      %s225 = int_to_ptr.vmem [resolvable:$true] %s224
      %230 = dma.vmem_to_hbm [thread:$0]  %s225, 256, %s2, [#allocation3], 128, 128, 8
    $region13: #{tpu_custom_call.1} parent=1 // pred_fallthru
      _
    // Predicated region
    $region14: #{tpu_custom_call.1} parent=1 // pred_check
      _
    $region15: #{tpu_custom_call.1} parent=1 // pred_check_branch
      %232 = sbr.rel (0) target = $region17
    $region16: #{tpu_custom_call.1} parent=1 // pred_region
      %233 = dma.done [#allocation3], 256
    $region17: #{tpu_custom_call.1} parent=1 // pred_fallthru
      _
    %234 = vsyncpa [#allocation3], 1

</llo_original>
